<compile_context>
chip_gen: v5e
topology: v5e:2x2
jax: 0.10.0
libtpu: 0.0.40
codegen_flags: <defaults>
</compile_context>

<pallas_src>
import numpy as np
import jax
import jax.numpy as jnp
from jax import lax
from jax.experimental import pallas as pl
from jax.experimental.pallas import tpu as pltpu

WINDOW_SIZES = (5, 10, 20)   # self.window_sizes (ascending -> nested, same-center windows)
NUM_HEADS = 4                # nn.MultiheadAttention(num_heads=4)


def _build_kernel(local_bounds, n_scales, hidden, bb):
    """Builds the fusion kernel as a closure over the static window geometry."""
    H = hidden

    def kernel(seq_ref, wp_ref, bp_ref, wqkv_ref, bqkv_ref, wo_ref, bo_ref,
               w1_ref, b1_ref, w2t_ref, b2_ref, pseg_ref, psegt_ref, out_ref):
        bf16 = jnp.bfloat16
        f32 = jnp.float32

        # ---- nested multi-scale window means (ring decomposition over the bf16 slab,
        #      f32 accumulation) -> per-scale Linear projections ----------------------
        projs = []
        run_sum = None
        prev_lo = prev_hi = None
        for i in range(n_scales):
            lo, hi = local_bounds[i]
            if i == 0:
                run_sum = jnp.sum(seq_ref[:, lo:hi, :].astype(f32), axis=1)
            else:
                if lo < prev_lo:
                    run_sum = run_sum + jnp.sum(seq_ref[:, lo:prev_lo, :].astype(f32), axis=1)
                if hi > prev_hi:
                    run_sum = run_sum + jnp.sum(seq_ref[:, prev_hi:hi, :].astype(f32), axis=1)
            prev_lo, prev_hi = lo, hi
            mean_i = run_sum * (1.0 / float(hi - lo))                      # (bb, H) f32
            proj = jnp.dot(mean_i.astype(bf16), wp_ref[i],
                           preferred_element_type=f32) + bp_ref[i:i + 1, :]
            projs.append(proj)

        # scale-major token matrix: row = scale * bb + batch
        x2 = jnp.concatenate(projs, axis=0)                                # (ns*bb, H)

        # ---- fused Q/K/V projection -------------------------------------------------
        qkv = jnp.dot(x2.astype(bf16), wqkv_ref[...],
                      preferred_element_type=f32) + bqkv_ref[...]          # (ns*bb, 3H)
        q_s = [qkv[s * bb:(s + 1) * bb, 0:H] for s in range(n_scales)]
        k_s = [qkv[s * bb:(s + 1) * bb, H:2 * H] for s in range(n_scales)]
        v_s = [qkv[s * bb:(s + 1) * bb, 2 * H:3 * H] for s in range(n_scales)]

        # ---- attention over the 3 scale tokens, vectorized over (batch, heads) ------
        # Processed per query-scale i so only (ns*bb, H) intermediates materialize.
        # scores[i,j][b,h] = (q_i[b] * k_j[b]) . head_mask_h / sqrt(head_dim)
        ctx = []
        for i in range(n_scales):
            prod_i = jnp.concatenate([q_s[i] * k_s[j] for j in range(n_scales)],
                                     axis=0)                               # (ns*bb, H)
            s_i = jnp.dot(prod_i, pseg_ref[...],
                          preferred_element_type=f32)                      # (ns*bb, heads)
            rows = [s_i[j * bb:(j + 1) * bb, :] for j in range(n_scales)]
            # numerically-stable softmax over the key-scale axis, per (batch, head)
            m = rows[0]
            for j in range(1, n_scales):
                m = jnp.maximum(m, rows[j])
            e = [jnp.exp(r - m) for r in rows]
            denom = e[0]
            for j in range(1, n_scales):
                denom = denom + e[j]
            inv = pl.reciprocal(denom, approx=True)
            p_i = jnp.concatenate([ej * inv for ej in e], axis=0)          # (ns*bb, heads)
            # broadcast each head's probability across that head's lanes
            pH_i = jnp.dot(p_i, psegt_ref[...],
                           preferred_element_type=f32)                     # (ns*bb, H)
            acc = pH_i[0:bb, :] * v_s[0]
            for j in range(1, n_scales):
                acc = acc + pH_i[j * bb:(j + 1) * bb, :] * v_s[j]
            ctx.append(acc)
        ctx2 = jnp.concatenate(ctx, axis=0)                                # (ns*bb, H)

        attn = jnp.dot(ctx2.astype(bf16), wo_ref[...],
                       preferred_element_type=f32) + bo_ref[...]           # (ns*bb, H)

        # mean over the scale tokens (rows are scale-major blocks of bb)
        comb = attn[0:bb, :]
        for s in range(1, n_scales):
            comb = comb + attn[s * bb:(s + 1) * bb, :]
        combined = comb * (1.0 / float(n_scales))                          # (bb, H)

        # ---- classifier MLP -----------------------------------------------------------
        h1 = jnp.dot(combined.astype(bf16), w1_ref[...],
                     preferred_element_type=f32) + b1_ref[...]             # (bb, C1)
        h1 = jnp.maximum(h1, 0.0)      # ReLU (dropout == identity in eval mode)
        # lane-dense logit row: (1, C1) x (bb, C1)^T -> (1, bb)  (avoids (bb,1) masked stores)
        out_row = lax.dot_general(w2t_ref[...], h1,
                                  dimension_numbers=(((1,), (1,)), ((), ())),
                                  preferred_element_type=f32) + b2_ref[...]
        out_ref[...] = out_row                                             # (1, bb)

    return kernel


def _pick_batch_block(B):
    """Default batch block: multiple of 8 (sublane-aligned), 3*bb fills the MXU M dim,
    and >= 2 grid steps whenever possible so v7x shards the batch over both cores."""
    for cand in (128, 96, 64, 48, 32, 16, 8):
        if B % cand == 0 and B // cand >= 2:
            return cand
    return B


def multi_scale_fusion_forward(seq, params, *, batch_block=None):
    """seq: (B, S, H) float32 encoder last_hidden_state.  Returns (B,) float32 logits."""
    B, S, H = seq.shape
    n_scales = len(WINDOW_SIZES)
    assert tuple(WINDOW_SIZES) == tuple(sorted(WINDOW_SIZES)), "window sizes must ascend"
    assert H % NUM_HEADS == 0, "hidden size must be divisible by num_heads"
    head_dim = H // NUM_HEADS
    C1 = params['w1'].shape[1]

    # host side: slice only the rows the kernel reads AND cast to bf16 in one pass
    center = S // 2
    bounds = [(max(0, center - w), min(S, center + w + 1)) for w in WINDOW_SIZES]
    slab_lo = min(lo for lo, _ in bounds)
    slab_hi = max(hi for _, hi in bounds)
    local_bounds = tuple((lo - slab_lo, hi - slab_lo) for lo, hi in bounds)
    W = slab_hi - slab_lo
    seq_win = seq[:, slab_lo:slab_hi, :].astype(jnp.bfloat16)

    bb = _pick_batch_block(B) if batch_block is None else batch_block
    assert B % bb == 0, "batch_block must divide batch"
    num_blocks = B // bb
    grid = (num_blocks,)

    # constant head-segment matrices (score scale 1/sqrt(head_dim) folded into pseg)
    eye = jnp.eye(NUM_HEADS, dtype=jnp.float32)
    pseg = jnp.repeat(eye, head_dim, axis=0) * (1.0 / float(head_dim) ** 0.5)   # (H, heads)
    psegt = jnp.repeat(eye, head_dim, axis=1)                                   # (heads, H)

    kernel = _build_kernel(local_bounds, n_scales, H, bb)

    inv = pl.Buffered(1)   # grid-invariant operands: never re-fetched -> single buffer
    in_specs = [
        pl.BlockSpec((bb, W, H), lambda b: (b, 0, 0)),                           # seq slab (bf16)
        pl.BlockSpec((n_scales, H, H), lambda b: (0, 0, 0), pipeline_mode=inv),  # wp   (bf16)
        pl.BlockSpec((n_scales, H), lambda b: (0, 0), pipeline_mode=inv),        # bp
        pl.BlockSpec((H, 3 * H), lambda b: (0, 0), pipeline_mode=inv),           # wqkv (bf16)
        pl.BlockSpec((1, 3 * H), lambda b: (0, 0), pipeline_mode=inv),           # bqkv
        pl.BlockSpec((H, H), lambda b: (0, 0), pipeline_mode=inv),               # wo   (bf16)
        pl.BlockSpec((1, H), lambda b: (0, 0), pipeline_mode=inv),               # bo
        pl.BlockSpec((H, C1), lambda b: (0, 0), pipeline_mode=inv),              # w1   (bf16)
        pl.BlockSpec((1, C1), lambda b: (0, 0), pipeline_mode=inv),              # b1
        pl.BlockSpec((1, C1), lambda b: (0, 0), pipeline_mode=inv),              # w2^T
        pl.BlockSpec((1, 1), lambda b: (0, 0), pipeline_mode=inv),               # b2
        pl.BlockSpec((H, NUM_HEADS), lambda b: (0, 0), pipeline_mode=inv),       # pseg
        pl.BlockSpec((NUM_HEADS, H), lambda b: (0, 0), pipeline_mode=inv),       # psegt
    ]

    # explicit VMEM budget: weights x1 (single-buffered) + seq block x2 + intermediates
    weight_keys = ('wp', 'bp', 'wqkv', 'bqkv', 'wo', 'bo', 'w1', 'b1', 'w2', 'b2')
    weight_bytes = sum(int(params[k].size) * params[k].dtype.itemsize for k in weight_keys)
    seq_block_bytes = bb * W * H * 2                    # bf16
    interm_bytes = 14 * n_scales * bb * H * 4           # qkv/x2/prod/pH/ctx/attn (f32)
    vmem_budget = weight_bytes + 2 * seq_block_bytes + interm_bytes
    try:
        cap = int(pltpu.get_tpu_info().vmem_capacity_bytes * 0.85)
    except Exception:
        cap = 100 * 1024 * 1024
    vmem_limit = int(min(max(int(vmem_budget * 1.5), 32 * 1024 * 1024), cap))

    out = pl.pallas_call(
        kernel,
        out_shape=jax.ShapeDtypeStruct((num_blocks, bb), jnp.float32),
        grid=grid,
        in_specs=in_specs,
        out_specs=pl.BlockSpec((1, bb), lambda b: (b, 0)),
        compiler_params=pltpu.CompilerParams(
            dimension_semantics=("parallel",),
            vmem_limit_bytes=vmem_limit),
    )(seq_win, params['wp'], params['bp'], params['wqkv'], params['bqkv'],
      params['wo'], params['bo'], params['w1'], params['b1'],
      params['w2'], params['b2'], pseg, psegt)
    return out.reshape(B)   # == output.squeeze(-1)


def init_params(key, H, hidden1=128):
    """Deterministic synthetic parameters (shapes follow the PyTorch module).
    Large matmul weights are stored in bf16 (MXU-native; halves HBM/VMEM bytes).
    w2 is stored pre-transposed as (1, hidden1) for the lane-dense output row."""
    n = len(WINDOW_SIZES)
    ks = jax.random.split(key, 10)

    def w(k, shape):
        return jax.random.normal(k, shape, jnp.float32) * 0.02

    bf16 = jnp.bfloat16
    return dict(
        wp=w(ks[0], (n, H, H)).astype(bf16),      bp=w(ks[1], (n, H)),       # scale_projections
        wqkv=w(ks[2], (H, 3 * H)).astype(bf16),   bqkv=w(ks[3], (1, 3 * H)), # MHA in_proj (fused)
        wo=w(ks[4], (H, H)).astype(bf16),         bo=w(ks[5], (1, H)),       # MHA out_proj
        w1=w(ks[6], (H, hidden1)).astype(bf16),   b1=w(ks[7], (1, hidden1)), # classifier[0]
        w2=w(ks[8], (1, hidden1)),                b2=w(ks[9], (1, 1)),       # classifier[3] (W^T)
    )


def reference_forward(seq, p):
    """Pure-JAX reference mirroring the PyTorch eval-mode forward with the same
    bf16-seq / bf16-weight / f32-accumulate policy as the kernel."""
    B, S, H = seq.shape
    hd = H // NUM_HEADS
    bf16 = jnp.bfloat16
    f32 = jnp.float32

    def mm(x, wgt):  # bf16 x bf16 matmul with f32 accumulation (kernel policy)
        return jnp.dot(x.astype(bf16), wgt.astype(bf16), preferred_element_type=f32)

    center = S // 2
    projs = []
    for i, wsz in enumerate(WINDOW_SIZES):
        lo, hi = max(0, center - wsz), min(S, center + wsz + 1)
        m = seq[:, lo:hi, :].astype(bf16).astype(f32).mean(axis=1)
        projs.append(mm(m, p['wp'][i]) + p['bp'][i])
    x = jnp.stack(projs, axis=1)                                   # (B, n_scales, H)
    n = x.shape[1]

    qkv = mm(x.reshape(B * n, H), p['wqkv']) + p['bqkv'][0]
    qkv = qkv.reshape(B, n, 3 * H)
    q, k, v = qkv[..., :H], qkv[..., H:2 * H], qkv[..., 2 * H:]
    qh = q.reshape(B, n, NUM_HEADS, hd).transpose(0, 2, 1, 3)
    kh = k.reshape(B, n, NUM_HEADS, hd).transpose(0, 2, 1, 3)
    vh = v.reshape(B, n, NUM_HEADS, hd).transpose(0, 2, 1, 3)
    s = jnp.einsum('bhqd,bhkd->bhqk', qh, kh) * (1.0 / float(hd) ** 0.5)
    a = jax.nn.softmax(s, axis=-1)
    ctx = jnp.einsum('bhqk,bhkd->bhqd', a, vh).transpose(0, 2, 1, 3).reshape(B, n, H)
    attn = (mm(ctx.reshape(B * n, H), p['wo']) + p['bo'][0]).reshape(B, n, H)
    combined = attn.mean(axis=1)
    h1 = jax.nn.relu(mm(combined, p['w1']) + p['b1'][0])
    out = jnp.dot(h1, p['w2'].T, preferred_element_type=f32) + p['b2'][0]
    return out[:, 0]


if __name__ == "__main__":
    key = jax.random.PRNGKey(0)
    kseq, kparams = jax.random.split(key)

    B, S, H = 2, 16, 32   # batch=2, seq_len=16, hidden=32 (4 heads -> head_dim=8)

    # Synthetic stand-in for protein_encoder(...).last_hidden_state
    seq = jax.random.normal(kseq, (B, S, H), jnp.float32)
    params = init_params(kparams, H)

    out = multi_scale_fusion_forward(seq, params)
    out = jax.block_until_ready(out)

    ref = reference_forward(seq, params)
    np.testing.assert_allclose(np.asarray(out), np.asarray(ref), rtol=2e-3, atol=2e-4)

    print("KERNEL_OK")
</pallas_src>

<mosaic_0001>
module attributes {stable_mosaic.version = 11 : i64} {
  func.func @kernel(%arg0: i32, %arg1: memref<2x16x32xbf16, #tpu.memory_space<vmem>>, %arg2: memref<3x32x32xbf16, #tpu.memory_space<vmem>>, %arg3: memref<3x32xf32, #tpu.memory_space<vmem>>, %arg4: memref<32x96xbf16, #tpu.memory_space<vmem>>, %arg5: memref<1x96xf32, #tpu.memory_space<vmem>>, %arg6: memref<32x32xbf16, #tpu.memory_space<vmem>>, %arg7: memref<1x32xf32, #tpu.memory_space<vmem>>, %arg8: memref<32x128xbf16, #tpu.memory_space<vmem>>, %arg9: memref<1x128xf32, #tpu.memory_space<vmem>>, %arg10: memref<1x128xf32, #tpu.memory_space<vmem>>, %arg11: memref<1x1xf32, #tpu.memory_space<vmem>>, %arg12: memref<32x4xf32, #tpu.memory_space<vmem>>, %arg13: memref<4x32xf32, #tpu.memory_space<vmem>>, %arg14: memref<1x2xf32, #tpu.memory_space<vmem>>) attributes {dimension_semantics = [#tpu.dimension_semantics<parallel>], iteration_bounds = array<i64: 1>, scalar_prefetch = 0 : i64, scratch_operands = 0 : i64, tpu.core_type = #tpu.core_type<tc>, window_params = [{transform_indices = @transform_0, window_bounds = array<i64: 2, 16, 32>}, {pipeline_mode = #tpu.pipeline_mode<synchronous>, transform_indices = @transform_1, window_bounds = array<i64: 3, 32, 32>}, {pipeline_mode = #tpu.pipeline_mode<synchronous>, transform_indices = @transform_2, window_bounds = array<i64: 3, 32>}, {pipeline_mode = #tpu.pipeline_mode<synchronous>, transform_indices = @transform_3, window_bounds = array<i64: 32, 96>}, {pipeline_mode = #tpu.pipeline_mode<synchronous>, transform_indices = @transform_4, window_bounds = array<i64: 1, 96>}, {pipeline_mode = #tpu.pipeline_mode<synchronous>, transform_indices = @transform_5, window_bounds = array<i64: 32, 32>}, {pipeline_mode = #tpu.pipeline_mode<synchronous>, transform_indices = @transform_6, window_bounds = array<i64: 1, 32>}, {pipeline_mode = #tpu.pipeline_mode<synchronous>, transform_indices = @transform_7, window_bounds = array<i64: 32, 128>}, {pipeline_mode = #tpu.pipeline_mode<synchronous>, transform_indices = @transform_8, window_bounds = array<i64: 1, 128>}, {pipeline_mode = #tpu.pipeline_mode<synchronous>, transform_indices = @transform_9, window_bounds = array<i64: 1, 128>}, {pipeline_mode = #tpu.pipeline_mode<synchronous>, transform_indices = @transform_10, window_bounds = array<i64: 1, 1>}, {pipeline_mode = #tpu.pipeline_mode<synchronous>, transform_indices = @transform_11, window_bounds = array<i64: 32, 4>}, {pipeline_mode = #tpu.pipeline_mode<synchronous>, transform_indices = @transform_12, window_bounds = array<i64: 4, 32>}, {transform_indices = @transform_13, window_bounds = array<i64: 1, 2>}]} {
    %c0 = arith.constant 0 : index
    %c3 = arith.constant 3 : index
    %c0_0 = arith.constant 0 : index
    %0 = vector.load %arg1[%c0, %c3, %c0_0] : memref<2x16x32xbf16, #tpu.memory_space<vmem>>, vector<2x11x32xbf16>
    %1 = arith.extf %0 : vector<2x11x32xbf16> to vector<2x11x32xf32>
    %cst = arith.constant dense<0.000000e+00> : vector<2x32xf32>
    %2 = vector.multi_reduction <add>, %1, %cst [1] : vector<2x11x32xf32> to vector<2x32xf32>
    %cst_1 = arith.constant 0.0909090936 : f32
    %3 = vector.broadcast %cst_1 : f32 to vector<2x32xf32>
    %4 = arith.mulf %2, %3 : vector<2x32xf32>
    %5 = arith.truncf %4 : vector<2x32xf32> to vector<2x32xbf16>
    %c0_2 = arith.constant 0 : index
    %c0_3 = arith.constant 0 : index
    %c0_4 = arith.constant 0 : index
    %6 = vector.load %arg2[%c0_2, %c0_3, %c0_4] : memref<3x32x32xbf16, #tpu.memory_space<vmem>>, vector<1x32x32xbf16>
    %7 = vector.shape_cast %6 : vector<1x32x32xbf16> to vector<32x32xbf16>
    %cst_5 = arith.constant dense<0.000000e+00> : vector<2x32xf32>
    %8 = tpu.matmul %5, %7, %cst_5 {dimension_numbers = #tpu.dot_dimension_numbers<[1], [0], [0], [1], [0, 0, 1, 1], [], []>} : vector<2x32xbf16>, vector<32x32xbf16>, vector<2x32xf32> -> vector<2x32xf32>
    %c0_6 = arith.constant 0 : index
    %c0_7 = arith.constant 0 : index
    %9 = vector.load %arg3[%c0_6, %c0_7] : memref<3x32xf32, #tpu.memory_space<vmem>>, vector<1x32xf32>
    %10 = vector.broadcast %9 : vector<1x32xf32> to vector<2x32xf32>
    %11 = arith.addf %8, %10 : vector<2x32xf32>
    %c0_8 = arith.constant 0 : index
    %c0_9 = arith.constant 0 : index
    %c0_10 = arith.constant 0 : index
    %12 = vector.load %arg1[%c0_8, %c0_9, %c0_10] : memref<2x16x32xbf16, #tpu.memory_space<vmem>>, vector<2x3x32xbf16>
    %13 = arith.extf %12 : vector<2x3x32xbf16> to vector<2x3x32xf32>
    %cst_11 = arith.constant dense<0.000000e+00> : vector<2x32xf32>
    %14 = vector.multi_reduction <add>, %13, %cst_11 [1] : vector<2x3x32xf32> to vector<2x32xf32>
    %15 = arith.addf %2, %14 : vector<2x32xf32>
    %c0_12 = arith.constant 0 : index
    %c14 = arith.constant 14 : index
    %c0_13 = arith.constant 0 : index
    %16 = vector.load %arg1[%c0_12, %c14, %c0_13] : memref<2x16x32xbf16, #tpu.memory_space<vmem>>, vector<2x2x32xbf16>
    %17 = arith.extf %16 : vector<2x2x32xbf16> to vector<2x2x32xf32>
    %cst_14 = arith.constant dense<0.000000e+00> : vector<2x32xf32>
    %18 = vector.multi_reduction <add>, %17, %cst_14 [1] : vector<2x2x32xf32> to vector<2x32xf32>
    %19 = arith.addf %15, %18 : vector<2x32xf32>
    %cst_15 = arith.constant 6.250000e-02 : f32
    %20 = vector.broadcast %cst_15 : f32 to vector<2x32xf32>
    %21 = arith.mulf %19, %20 : vector<2x32xf32>
    %22 = arith.truncf %21 : vector<2x32xf32> to vector<2x32xbf16>
    %c1 = arith.constant 1 : index
    %c0_16 = arith.constant 0 : index
    %c0_17 = arith.constant 0 : index
    %23 = vector.load %arg2[%c1, %c0_16, %c0_17] : memref<3x32x32xbf16, #tpu.memory_space<vmem>>, vector<1x32x32xbf16>
    %24 = vector.shape_cast %23 : vector<1x32x32xbf16> to vector<32x32xbf16>
    %cst_18 = arith.constant dense<0.000000e+00> : vector<2x32xf32>
    %25 = tpu.matmul %22, %24, %cst_18 {dimension_numbers = #tpu.dot_dimension_numbers<[1], [0], [0], [1], [0, 0, 1, 1], [], []>} : vector<2x32xbf16>, vector<32x32xbf16>, vector<2x32xf32> -> vector<2x32xf32>
    %c1_19 = arith.constant 1 : index
    %c0_20 = arith.constant 0 : index
    %26 = vector.load %arg3[%c1_19, %c0_20] : memref<3x32xf32, #tpu.memory_space<vmem>>, vector<1x32xf32>
    %27 = vector.broadcast %26 : vector<1x32xf32> to vector<2x32xf32>
    %28 = arith.addf %25, %27 : vector<2x32xf32>
    %cst_21 = arith.constant 6.250000e-02 : f32
    %29 = vector.broadcast %cst_21 : f32 to vector<2x32xf32>
    %30 = arith.mulf %19, %29 : vector<2x32xf32>
    %31 = arith.truncf %30 : vector<2x32xf32> to vector<2x32xbf16>
    %c2 = arith.constant 2 : index
    %c0_22 = arith.constant 0 : index
    %c0_23 = arith.constant 0 : index
    %32 = vector.load %arg2[%c2, %c0_22, %c0_23] : memref<3x32x32xbf16, #tpu.memory_space<vmem>>, vector<1x32x32xbf16>
    %33 = vector.shape_cast %32 : vector<1x32x32xbf16> to vector<32x32xbf16>
    %cst_24 = arith.constant dense<0.000000e+00> : vector<2x32xf32>
    %34 = tpu.matmul %31, %33, %cst_24 {dimension_numbers = #tpu.dot_dimension_numbers<[1], [0], [0], [1], [0, 0, 1, 1], [], []>} : vector<2x32xbf16>, vector<32x32xbf16>, vector<2x32xf32> -> vector<2x32xf32>
    %c2_25 = arith.constant 2 : index
    %c0_26 = arith.constant 0 : index
    %35 = vector.load %arg3[%c2_25, %c0_26] : memref<3x32xf32, #tpu.memory_space<vmem>>, vector<1x32xf32>
    %36 = vector.broadcast %35 : vector<1x32xf32> to vector<2x32xf32>
    %37 = arith.addf %34, %36 : vector<2x32xf32>
    %38 = tpu.concatenate %11, %28, %37 in 0 : vector<2x32xf32>, vector<2x32xf32>, vector<2x32xf32> -> vector<6x32xf32>
    %39 = arith.truncf %38 : vector<6x32xf32> to vector<6x32xbf16>
    %c0_27 = arith.constant 0 : index
    %c0_28 = arith.constant 0 : index
    %40 = vector.load %arg4[%c0_27, %c0_28] : memref<32x96xbf16, #tpu.memory_space<vmem>>, vector<32x96xbf16>
    %cst_29 = arith.constant dense<0.000000e+00> : vector<6x96xf32>
    %41 = tpu.matmul %39, %40, %cst_29 {dimension_numbers = #tpu.dot_dimension_numbers<[1], [0], [0], [1], [0, 0, 1, 1], [], []>} : vector<6x32xbf16>, vector<32x96xbf16>, vector<6x96xf32> -> vector<6x96xf32>
    %c0_30 = arith.constant 0 : index
    %c0_31 = arith.constant 0 : index
    %42 = vector.load %arg5[%c0_30, %c0_31] : memref<1x96xf32, #tpu.memory_space<vmem>>, vector<1x96xf32>
    %43 = vector.broadcast %42 : vector<1x96xf32> to vector<6x96xf32>
    %44 = arith.addf %41, %43 : vector<6x96xf32>
    %45 = vector.extract_strided_slice %44 {offsets = [0, 0], sizes = [2, 32], strides = [1, 1]} : vector<6x96xf32> to vector<2x32xf32>
    %46 = vector.extract_strided_slice %44 {offsets = [2, 0], sizes = [2, 32], strides = [1, 1]} : vector<6x96xf32> to vector<2x32xf32>
    %47 = vector.extract_strided_slice %44 {offsets = [4, 0], sizes = [2, 32], strides = [1, 1]} : vector<6x96xf32> to vector<2x32xf32>
    %48 = vector.extract_strided_slice %44 {offsets = [0, 32], sizes = [2, 32], strides = [1, 1]} : vector<6x96xf32> to vector<2x32xf32>
    %49 = vector.extract_strided_slice %44 {offsets = [2, 32], sizes = [2, 32], strides = [1, 1]} : vector<6x96xf32> to vector<2x32xf32>
    %50 = vector.extract_strided_slice %44 {offsets = [4, 32], sizes = [2, 32], strides = [1, 1]} : vector<6x96xf32> to vector<2x32xf32>
    %51 = vector.extract_strided_slice %44 {offsets = [0, 64], sizes = [2, 32], strides = [1, 1]} : vector<6x96xf32> to vector<2x32xf32>
    %52 = vector.extract_strided_slice %44 {offsets = [2, 64], sizes = [2, 32], strides = [1, 1]} : vector<6x96xf32> to vector<2x32xf32>
    %53 = vector.extract_strided_slice %44 {offsets = [4, 64], sizes = [2, 32], strides = [1, 1]} : vector<6x96xf32> to vector<2x32xf32>
    %54 = arith.mulf %45, %48 : vector<2x32xf32>
    %55 = arith.mulf %45, %49 : vector<2x32xf32>
    %56 = arith.mulf %45, %50 : vector<2x32xf32>
    %57 = tpu.concatenate %54, %55, %56 in 0 : vector<2x32xf32>, vector<2x32xf32>, vector<2x32xf32> -> vector<6x32xf32>
    %c0_32 = arith.constant 0 : index
    %c0_33 = arith.constant 0 : index
    %58 = vector.load %arg12[%c0_32, %c0_33] : memref<32x4xf32, #tpu.memory_space<vmem>>, vector<32x4xf32>
    %cst_34 = arith.constant dense<0.000000e+00> : vector<6x4xf32>
    %59 = tpu.matmul %57, %58, %cst_34 {dimension_numbers = #tpu.dot_dimension_numbers<[1], [0], [0], [1], [0, 0, 1, 1], [], []>} : vector<6x32xf32>, vector<32x4xf32>, vector<6x4xf32> -> vector<6x4xf32>
    %60 = vector.extract_strided_slice %59 {offsets = [0, 0], sizes = [2, 4], strides = [1, 1]} : vector<6x4xf32> to vector<2x4xf32>
    %61 = vector.extract_strided_slice %59 {offsets = [2, 0], sizes = [2, 4], strides = [1, 1]} : vector<6x4xf32> to vector<2x4xf32>
    %62 = vector.extract_strided_slice %59 {offsets = [4, 0], sizes = [2, 4], strides = [1, 1]} : vector<6x4xf32> to vector<2x4xf32>
    %63 = arith.maximumf %60, %61 : vector<2x4xf32>
    %64 = arith.maximumf %63, %62 : vector<2x4xf32>
    %65 = arith.subf %60, %64 : vector<2x4xf32>
    %66 = math.exp %65 : vector<2x4xf32>
    %67 = arith.subf %61, %64 : vector<2x4xf32>
    %68 = math.exp %67 : vector<2x4xf32>
    %69 = arith.subf %62, %64 : vector<2x4xf32>
    %70 = math.exp %69 : vector<2x4xf32>
    %71 = arith.addf %66, %68 : vector<2x4xf32>
    %72 = arith.addf %71, %70 : vector<2x4xf32>
    %73 = tpu.reciprocal %72 {approx = true} : vector<2x4xf32> -> vector<2x4xf32>
    %74 = arith.mulf %66, %73 : vector<2x4xf32>
    %75 = arith.mulf %68, %73 : vector<2x4xf32>
    %76 = arith.mulf %70, %73 : vector<2x4xf32>
    %77 = tpu.concatenate %74, %75, %76 in 0 : vector<2x4xf32>, vector<2x4xf32>, vector<2x4xf32> -> vector<6x4xf32>
    %c0_35 = arith.constant 0 : index
    %c0_36 = arith.constant 0 : index
    %78 = vector.load %arg13[%c0_35, %c0_36] : memref<4x32xf32, #tpu.memory_space<vmem>>, vector<4x32xf32>
    %cst_37 = arith.constant dense<0.000000e+00> : vector<6x32xf32>
    %79 = tpu.matmul %77, %78, %cst_37 {dimension_numbers = #tpu.dot_dimension_numbers<[1], [0], [0], [1], [0, 0, 1, 1], [], []>} : vector<6x4xf32>, vector<4x32xf32>, vector<6x32xf32> -> vector<6x32xf32>
    %80 = vector.extract_strided_slice %79 {offsets = [0, 0], sizes = [2, 32], strides = [1, 1]} : vector<6x32xf32> to vector<2x32xf32>
    %81 = arith.mulf %80, %51 : vector<2x32xf32>
    %82 = vector.extract_strided_slice %79 {offsets = [2, 0], sizes = [2, 32], strides = [1, 1]} : vector<6x32xf32> to vector<2x32xf32>
    %83 = arith.mulf %82, %52 : vector<2x32xf32>
    %84 = arith.addf %81, %83 : vector<2x32xf32>
    %85 = vector.extract_strided_slice %79 {offsets = [4, 0], sizes = [2, 32], strides = [1, 1]} : vector<6x32xf32> to vector<2x32xf32>
    %86 = arith.mulf %85, %53 : vector<2x32xf32>
    %87 = arith.addf %84, %86 : vector<2x32xf32>
    %88 = arith.mulf %46, %48 : vector<2x32xf32>
    %89 = arith.mulf %46, %49 : vector<2x32xf32>
    %90 = arith.mulf %46, %50 : vector<2x32xf32>
    %91 = tpu.concatenate %88, %89, %90 in 0 : vector<2x32xf32>, vector<2x32xf32>, vector<2x32xf32> -> vector<6x32xf32>
    %c0_38 = arith.constant 0 : index
    %c0_39 = arith.constant 0 : index
    %92 = vector.load %arg12[%c0_38, %c0_39] : memref<32x4xf32, #tpu.memory_space<vmem>>, vector<32x4xf32>
    %cst_40 = arith.constant dense<0.000000e+00> : vector<6x4xf32>
    %93 = tpu.matmul %91, %92, %cst_40 {dimension_numbers = #tpu.dot_dimension_numbers<[1], [0], [0], [1], [0, 0, 1, 1], [], []>} : vector<6x32xf32>, vector<32x4xf32>, vector<6x4xf32> -> vector<6x4xf32>
    %94 = vector.extract_strided_slice %93 {offsets = [0, 0], sizes = [2, 4], strides = [1, 1]} : vector<6x4xf32> to vector<2x4xf32>
    %95 = vector.extract_strided_slice %93 {offsets = [2, 0], sizes = [2, 4], strides = [1, 1]} : vector<6x4xf32> to vector<2x4xf32>
    %96 = vector.extract_strided_slice %93 {offsets = [4, 0], sizes = [2, 4], strides = [1, 1]} : vector<6x4xf32> to vector<2x4xf32>
    %97 = arith.maximumf %94, %95 : vector<2x4xf32>
    %98 = arith.maximumf %97, %96 : vector<2x4xf32>
    %99 = arith.subf %94, %98 : vector<2x4xf32>
    %100 = math.exp %99 : vector<2x4xf32>
    %101 = arith.subf %95, %98 : vector<2x4xf32>
    %102 = math.exp %101 : vector<2x4xf32>
    %103 = arith.subf %96, %98 : vector<2x4xf32>
    %104 = math.exp %103 : vector<2x4xf32>
    %105 = arith.addf %100, %102 : vector<2x4xf32>
    %106 = arith.addf %105, %104 : vector<2x4xf32>
    %107 = tpu.reciprocal %106 {approx = true} : vector<2x4xf32> -> vector<2x4xf32>
    %108 = arith.mulf %100, %107 : vector<2x4xf32>
    %109 = arith.mulf %102, %107 : vector<2x4xf32>
    %110 = arith.mulf %104, %107 : vector<2x4xf32>
    %111 = tpu.concatenate %108, %109, %110 in 0 : vector<2x4xf32>, vector<2x4xf32>, vector<2x4xf32> -> vector<6x4xf32>
    %c0_41 = arith.constant 0 : index
    %c0_42 = arith.constant 0 : index
    %112 = vector.load %arg13[%c0_41, %c0_42] : memref<4x32xf32, #tpu.memory_space<vmem>>, vector<4x32xf32>
    %cst_43 = arith.constant dense<0.000000e+00> : vector<6x32xf32>
    %113 = tpu.matmul %111, %112, %cst_43 {dimension_numbers = #tpu.dot_dimension_numbers<[1], [0], [0], [1], [0, 0, 1, 1], [], []>} : vector<6x4xf32>, vector<4x32xf32>, vector<6x32xf32> -> vector<6x32xf32>
    %114 = vector.extract_strided_slice %113 {offsets = [0, 0], sizes = [2, 32], strides = [1, 1]} : vector<6x32xf32> to vector<2x32xf32>
    %115 = arith.mulf %114, %51 : vector<2x32xf32>
    %116 = vector.extract_strided_slice %113 {offsets = [2, 0], sizes = [2, 32], strides = [1, 1]} : vector<6x32xf32> to vector<2x32xf32>
    %117 = arith.mulf %116, %52 : vector<2x32xf32>
    %118 = arith.addf %115, %117 : vector<2x32xf32>
    %119 = vector.extract_strided_slice %113 {offsets = [4, 0], sizes = [2, 32], strides = [1, 1]} : vector<6x32xf32> to vector<2x32xf32>
    %120 = arith.mulf %119, %53 : vector<2x32xf32>
    %121 = arith.addf %118, %120 : vector<2x32xf32>
    %122 = arith.mulf %47, %48 : vector<2x32xf32>
    %123 = arith.mulf %47, %49 : vector<2x32xf32>
    %124 = arith.mulf %47, %50 : vector<2x32xf32>
    %125 = tpu.concatenate %122, %123, %124 in 0 : vector<2x32xf32>, vector<2x32xf32>, vector<2x32xf32> -> vector<6x32xf32>
    %c0_44 = arith.constant 0 : index
    %c0_45 = arith.constant 0 : index
    %126 = vector.load %arg12[%c0_44, %c0_45] : memref<32x4xf32, #tpu.memory_space<vmem>>, vector<32x4xf32>
    %cst_46 = arith.constant dense<0.000000e+00> : vector<6x4xf32>
    %127 = tpu.matmul %125, %126, %cst_46 {dimension_numbers = #tpu.dot_dimension_numbers<[1], [0], [0], [1], [0, 0, 1, 1], [], []>} : vector<6x32xf32>, vector<32x4xf32>, vector<6x4xf32> -> vector<6x4xf32>
    %128 = vector.extract_strided_slice %127 {offsets = [0, 0], sizes = [2, 4], strides = [1, 1]} : vector<6x4xf32> to vector<2x4xf32>
    %129 = vector.extract_strided_slice %127 {offsets = [2, 0], sizes = [2, 4], strides = [1, 1]} : vector<6x4xf32> to vector<2x4xf32>
    %130 = vector.extract_strided_slice %127 {offsets = [4, 0], sizes = [2, 4], strides = [1, 1]} : vector<6x4xf32> to vector<2x4xf32>
    %131 = arith.maximumf %128, %129 : vector<2x4xf32>
    %132 = arith.maximumf %131, %130 : vector<2x4xf32>
    %133 = arith.subf %128, %132 : vector<2x4xf32>
    %134 = math.exp %133 : vector<2x4xf32>
    %135 = arith.subf %129, %132 : vector<2x4xf32>
    %136 = math.exp %135 : vector<2x4xf32>
    %137 = arith.subf %130, %132 : vector<2x4xf32>
    %138 = math.exp %137 : vector<2x4xf32>
    %139 = arith.addf %134, %136 : vector<2x4xf32>
    %140 = arith.addf %139, %138 : vector<2x4xf32>
    %141 = tpu.reciprocal %140 {approx = true} : vector<2x4xf32> -> vector<2x4xf32>
    %142 = arith.mulf %134, %141 : vector<2x4xf32>
    %143 = arith.mulf %136, %141 : vector<2x4xf32>
    %144 = arith.mulf %138, %141 : vector<2x4xf32>
    %145 = tpu.concatenate %142, %143, %144 in 0 : vector<2x4xf32>, vector<2x4xf32>, vector<2x4xf32> -> vector<6x4xf32>
    %c0_47 = arith.constant 0 : index
    %c0_48 = arith.constant 0 : index
    %146 = vector.load %arg13[%c0_47, %c0_48] : memref<4x32xf32, #tpu.memory_space<vmem>>, vector<4x32xf32>
    %cst_49 = arith.constant dense<0.000000e+00> : vector<6x32xf32>
    %147 = tpu.matmul %145, %146, %cst_49 {dimension_numbers = #tpu.dot_dimension_numbers<[1], [0], [0], [1], [0, 0, 1, 1], [], []>} : vector<6x4xf32>, vector<4x32xf32>, vector<6x32xf32> -> vector<6x32xf32>
    %148 = vector.extract_strided_slice %147 {offsets = [0, 0], sizes = [2, 32], strides = [1, 1]} : vector<6x32xf32> to vector<2x32xf32>
    %149 = arith.mulf %148, %51 : vector<2x32xf32>
    %150 = vector.extract_strided_slice %147 {offsets = [2, 0], sizes = [2, 32], strides = [1, 1]} : vector<6x32xf32> to vector<2x32xf32>
    %151 = arith.mulf %150, %52 : vector<2x32xf32>
    %152 = arith.addf %149, %151 : vector<2x32xf32>
    %153 = vector.extract_strided_slice %147 {offsets = [4, 0], sizes = [2, 32], strides = [1, 1]} : vector<6x32xf32> to vector<2x32xf32>
    %154 = arith.mulf %153, %53 : vector<2x32xf32>
    %155 = arith.addf %152, %154 : vector<2x32xf32>
    %156 = tpu.concatenate %87, %121, %155 in 0 : vector<2x32xf32>, vector<2x32xf32>, vector<2x32xf32> -> vector<6x32xf32>
    %157 = arith.truncf %156 : vector<6x32xf32> to vector<6x32xbf16>
    %c0_50 = arith.constant 0 : index
    %c0_51 = arith.constant 0 : index
    %158 = vector.load %arg6[%c0_50, %c0_51] : memref<32x32xbf16, #tpu.memory_space<vmem>>, vector<32x32xbf16>
    %cst_52 = arith.constant dense<0.000000e+00> : vector<6x32xf32>
    %159 = tpu.matmul %157, %158, %cst_52 {dimension_numbers = #tpu.dot_dimension_numbers<[1], [0], [0], [1], [0, 0, 1, 1], [], []>} : vector<6x32xbf16>, vector<32x32xbf16>, vector<6x32xf32> -> vector<6x32xf32>
    %c0_53 = arith.constant 0 : index
    %c0_54 = arith.constant 0 : index
    %160 = vector.load %arg7[%c0_53, %c0_54] : memref<1x32xf32, #tpu.memory_space<vmem>>, vector<1x32xf32>
    %161 = vector.broadcast %160 : vector<1x32xf32> to vector<6x32xf32>
    %162 = arith.addf %159, %161 : vector<6x32xf32>
    %163 = vector.extract_strided_slice %162 {offsets = [0, 0], sizes = [2, 32], strides = [1, 1]} : vector<6x32xf32> to vector<2x32xf32>
    %164 = vector.extract_strided_slice %162 {offsets = [2, 0], sizes = [2, 32], strides = [1, 1]} : vector<6x32xf32> to vector<2x32xf32>
    %165 = arith.addf %163, %164 : vector<2x32xf32>
    %166 = vector.extract_strided_slice %162 {offsets = [4, 0], sizes = [2, 32], strides = [1, 1]} : vector<6x32xf32> to vector<2x32xf32>
    %167 = arith.addf %165, %166 : vector<2x32xf32>
    %cst_55 = arith.constant 0.333333343 : f32
    %168 = vector.broadcast %cst_55 : f32 to vector<2x32xf32>
    %169 = arith.mulf %167, %168 : vector<2x32xf32>
    %170 = arith.truncf %169 : vector<2x32xf32> to vector<2x32xbf16>
    %c0_56 = arith.constant 0 : index
    %c0_57 = arith.constant 0 : index
    %171 = vector.load %arg8[%c0_56, %c0_57] : memref<32x128xbf16, #tpu.memory_space<vmem>>, vector<32x128xbf16>
    %cst_58 = arith.constant dense<0.000000e+00> : vector<2x128xf32>
    %172 = tpu.matmul %170, %171, %cst_58 {dimension_numbers = #tpu.dot_dimension_numbers<[1], [0], [0], [1], [0, 0, 1, 1], [], []>} : vector<2x32xbf16>, vector<32x128xbf16>, vector<2x128xf32> -> vector<2x128xf32>
    %c0_59 = arith.constant 0 : index
    %c0_60 = arith.constant 0 : index
    %173 = vector.load %arg9[%c0_59, %c0_60] : memref<1x128xf32, #tpu.memory_space<vmem>>, vector<1x128xf32>
    %174 = vector.broadcast %173 : vector<1x128xf32> to vector<2x128xf32>
    %175 = arith.addf %172, %174 : vector<2x128xf32>
    %cst_61 = arith.constant 0.000000e+00 : f32
    %176 = vector.broadcast %cst_61 : f32 to vector<2x128xf32>
    %177 = arith.maximumf %175, %176 : vector<2x128xf32>
    %c0_62 = arith.constant 0 : index
    %c0_63 = arith.constant 0 : index
    %178 = vector.load %arg10[%c0_62, %c0_63] : memref<1x128xf32, #tpu.memory_space<vmem>>, vector<1x128xf32>
    %cst_64 = arith.constant dense<0.000000e+00> : vector<1x2xf32>
    %179 = tpu.matmul %178, %177, %cst_64 {dimension_numbers = #tpu.dot_dimension_numbers<[1], [1], [0], [0], [0, 0, 1, 0], [], []>} : vector<1x128xf32>, vector<2x128xf32>, vector<1x2xf32> -> vector<1x2xf32>
    %c0_65 = arith.constant 0 : index
    %c0_66 = arith.constant 0 : index
    %180 = vector.load %arg11[%c0_65, %c0_66] : memref<1x1xf32, #tpu.memory_space<vmem>>, vector<1x1xf32>
    %181 = vector.broadcast %180 : vector<1x1xf32> to vector<1x2xf32>
    %182 = arith.addf %179, %181 : vector<1x2xf32>
    %c0_67 = arith.constant 0 : index
    %c0_68 = arith.constant 0 : index
    %183 = vector.load %arg14[%c0_67, %c0_68] : memref<1x2xf32, #tpu.memory_space<vmem>>, vector<1x2xf32>
    tpu.vector_store %arg14[%c0_67, %c0_68], %182 {strides = array<i32>} : memref<1x2xf32, #tpu.memory_space<vmem>>, vector<1x2xf32>,
    return
  }
  func.func @transform_0(%arg0: i32) -> (i32, i32, i32) {
    %c0_i32 = arith.constant 0 : i32
    %c0_i32_0 = arith.constant 0 : i32
    %c0_i32_1 = arith.constant 0 : i32
    return %arg0, %c0_i32, %c0_i32_0 : i32, i32, i32
  }
  func.func @transform_1(%arg0: i32) -> (i32, i32, i32) {
    %c0_i32 = arith.constant 0 : i32
    %c0_i32_0 = arith.constant 0 : i32
    %c0_i32_1 = arith.constant 0 : i32
    %c0_i32_2 = arith.constant 0 : i32
    return %c0_i32, %c0_i32_0, %c0_i32_1 : i32, i32, i32
  }
  func.func @transform_2(%arg0: i32) -> (i32, i32) {
    %c0_i32 = arith.constant 0 : i32
    %c0_i32_0 = arith.constant 0 : i32
    %c0_i32_1 = arith.constant 0 : i32
    return %c0_i32, %c0_i32_0 : i32, i32
  }
  func.func @transform_3(%arg0: i32) -> (i32, i32) {
    %c0_i32 = arith.constant 0 : i32
    %c0_i32_0 = arith.constant 0 : i32
    %c0_i32_1 = arith.constant 0 : i32
    return %c0_i32, %c0_i32_0 : i32, i32
  }
  func.func @transform_4(%arg0: i32) -> (i32, i32) {
    %c0_i32 = arith.constant 0 : i32
    %c0_i32_0 = arith.constant 0 : i32
    %c0_i32_1 = arith.constant 0 : i32
    return %c0_i32, %c0_i32_0 : i32, i32
  }
  func.func @transform_5(%arg0: i32) -> (i32, i32) {
    %c0_i32 = arith.constant 0 : i32
    %c0_i32_0 = arith.constant 0 : i32
    %c0_i32_1 = arith.constant 0 : i32
    return %c0_i32, %c0_i32_0 : i32, i32
  }
  func.func @transform_6(%arg0: i32) -> (i32, i32) {
    %c0_i32 = arith.constant 0 : i32
    %c0_i32_0 = arith.constant 0 : i32
    %c0_i32_1 = arith.constant 0 : i32
    return %c0_i32, %c0_i32_0 : i32, i32
  }
  func.func @transform_7(%arg0: i32) -> (i32, i32) {
    %c0_i32 = arith.constant 0 : i32
    %c0_i32_0 = arith.constant 0 : i32
    %c0_i32_1 = arith.constant 0 : i32
    return %c0_i32, %c0_i32_0 : i32, i32
  }
  func.func @transform_8(%arg0: i32) -> (i32, i32) {
    %c0_i32 = arith.constant 0 : i32
    %c0_i32_0 = arith.constant 0 : i32
    %c0_i32_1 = arith.constant 0 : i32
    return %c0_i32, %c0_i32_0 : i32, i32
  }
  func.func @transform_9(%arg0: i32) -> (i32, i32) {
    %c0_i32 = arith.constant 0 : i32
    %c0_i32_0 = arith.constant 0 : i32
    %c0_i32_1 = arith.constant 0 : i32
    return %c0_i32, %c0_i32_0 : i32, i32
  }
  func.func @transform_10(%arg0: i32) -> (i32, i32) {
    %c0_i32 = arith.constant 0 : i32
    %c0_i32_0 = arith.constant 0 : i32
    %c0_i32_1 = arith.constant 0 : i32
    return %c0_i32, %c0_i32_0 : i32, i32
  }
  func.func @transform_11(%arg0: i32) -> (i32, i32) {
    %c0_i32 = arith.constant 0 : i32
    %c0_i32_0 = arith.constant 0 : i32
    %c0_i32_1 = arith.constant 0 : i32
    return %c0_i32, %c0_i32_0 : i32, i32
  }
  func.func @transform_12(%arg0: i32) -> (i32, i32) {
    %c0_i32 = arith.constant 0 : i32
    %c0_i32_0 = arith.constant 0 : i32
    %c0_i32_1 = arith.constant 0 : i32
    return %c0_i32, %c0_i32_0 : i32, i32
  }
  func.func @transform_13(%arg0: i32) -> (i32, i32) {
    %c0_i32 = arith.constant 0 : i32
    %c0_i32_0 = arith.constant 0 : i32
    return %arg0, %c0_i32 : i32, i32
  }
}

</mosaic_0001>

<llo_original>
// kernel: tpu_custom_call.1
$region0: #{tpu_custom_call.1}
  #allocation0 [shape = 'u32[]', space=smem, size = 0x4, offset = 0x4, fixed_abs, tag = 'smem constant byte address 0x4 - core index']
  #allocation1 [shape = 'u32[72,128]{1,0:T(1,128)}', space=vmem, size = 0x9000, scoped, tag = 'internal scratch']
  #allocation2 [shape = 'f32[1,1]{1,0:T(1,128)S(1)}', space=vmem, size = 0x200, scoped, tag = 'scoped memory for tpu_custom_call.1']
  %s0 = inlined_call_operand.vmem [shape: bf16[2,16,32], index: 0, kind: input, shape index: {}]
  %s1 = inlined_call_operand.hbm [shape: bf16[3,32,32], index: 1, kind: input, shape index: {}]
  %s2 = inlined_call_operand.vmem [shape: f32[3,32], index: 2, kind: input, shape index: {}]
  %s3 = inlined_call_operand.vmem [shape: bf16[32,96], index: 3, kind: input, shape index: {}]
  %s4 = inlined_call_operand.hbm [shape: f32[1,96], index: 4, kind: input, shape index: {}]
  %s5 = inlined_call_operand.hbm [shape: bf16[32,32], index: 5, kind: input, shape index: {}]
  %s6 = inlined_call_operand.hbm [shape: f32[1,32], index: 6, kind: input, shape index: {}]
  %s7 = inlined_call_operand.hbm [shape: bf16[32,128], index: 7, kind: input, shape index: {}]
  %s8 = inlined_call_operand.vmem [shape: f32[1,128], index: 8, kind: input, shape index: {}]
  %s9 = inlined_call_operand.vmem [shape: f32[1,128], index: 9, kind: input, shape index: {}]
  %s10 = inlined_call_operand.<no memory space> [shape: f32[1,1], index: 10, kind: input, shape index: {}]
  %s11 = inlined_call_operand.vmem [shape: f32[32,4], index: 11, kind: input, shape index: {}]
  %s12 = inlined_call_operand.vmem [shape: f32[4,32], index: 12, kind: input, shape index: {}]
  %s13 = inlined_call_operand.hbm [shape: f32[1,2], index: 13, kind: output, shape index: {}]
  %s14 = sld [smem:[#allocation0]]
  $region82: #{tpu_custom_call.1} parent=0
    _
  %s16 = ssub.s32 1, %s14
  %s17 = scalar_select 0, %s16, %s14
  %v18 = vstv %s10
  %19 = vst [vmem:[#allocation2] sm:$0x1] %v18
  $region1: #{tpu_custom_call.1} parent=0
    #allocation3 [shape = 'u8[24576]{0}', space=vmem, size = 0x6000, scoped, tag = 'input window, operand 1, single buffered']
    #allocation4 [shape = 's32[1]{0}', space=sflag, size = 0x4, scoped, tag = 'scoped memory for tpu_custom_call.1']
    #allocation5 [shape = 's32[1]{0}', space=sflag, size = 0x4, scoped, tag = 'scoped memory for tpu_custom_call.1']
    #allocation6 [shape = 'u8[512]{0}', space=vmem, size = 0x400, scoped, tag = 'input window, operand 4, single buffered']
    #allocation7 [shape = 's32[1]{0}', space=sflag, size = 0x4, scoped, tag = 'scoped memory for tpu_custom_call.1']
    #allocation8 [shape = 'u8[8192]{0}', space=vmem, size = 0x2000, scoped, tag = 'input window, operand 5, single buffered']
    #allocation9 [shape = 'u8[512]{0}', space=vmem, size = 0x400, scoped, tag = 'input window, operand 6, single buffered']
    #allocation10 [shape = 's32[1]{0}', space=sflag, size = 0x4, scoped, tag = 'scoped memory for tpu_custom_call.1']
    #allocation11 [shape = 'u8[8192]{0}', space=vmem, size = 0x2000, scoped, tag = 'input window, operand 7, single buffered']
    #allocation12 [shape = 'u8[512]{0}', space=vmem, size = 0x400, scoped, tag = 'output window, operand 0, single buffered']
    %20 = vsyncpa [#allocation4], 0
    %21 = vsyncpa [#allocation7], 0
    %22 = vsyncpa [#allocation10], 0
    %23 = vsyncpa [#allocation5], 0
    // Predicated region
    $region2: #{tpu_custom_call.1} parent=1 // pred_check
      _
    $region3: #{tpu_custom_call.1} parent=1 // pred_check_branch
      %25 = sbr.rel (0) target = $region5
    $region4: #{tpu_custom_call.1} parent=1 // pred_region
      _
    $region5: #{tpu_custom_call.1} parent=1 // pred_fallthru
      _
    // Predicated region
    $region6: #{tpu_custom_call.1} parent=1 // pred_check
      _
    $region7: #{tpu_custom_call.1} parent=1 // pred_check_branch
      %27 = sbr.rel (0) target = $region9
    $region8: #{tpu_custom_call.1} parent=1 // pred_region
      %29 = vsyncadd [#allocation4], 0
      %s30 = sshll.u32 %s1, 4
      %s31 = int_to_ptr.hbm [resolvable:$true] %s30
      %s32 = sshll.u32 [#allocation3], 4
      %s33 = int_to_ptr.vmem [resolvable:$true] %s32
      %38 = dma.hbm_to_vmem [thread:$0]  %s31, 768, %s33, [#allocation4], 64, 64, 4
    $region9: #{tpu_custom_call.1} parent=1 // pred_fallthru
      _
    // Predicated region
    $region10: #{tpu_custom_call.1} parent=1 // pred_check
      _
    $region11: #{tpu_custom_call.1} parent=1 // pred_check_branch
      %40 = sbr.rel (0) target = $region13
    $region12: #{tpu_custom_call.1} parent=1 // pred_region
      _
    $region13: #{tpu_custom_call.1} parent=1 // pred_fallthru
      _
    // Predicated region
    $region14: #{tpu_custom_call.1} parent=1 // pred_check
      _
    $region15: #{tpu_custom_call.1} parent=1 // pred_check_branch
      %42 = sbr.rel (0) target = $region17
    $region16: #{tpu_custom_call.1} parent=1 // pred_region
      _
    $region17: #{tpu_custom_call.1} parent=1 // pred_fallthru
      _
    // Predicated region
    $region18: #{tpu_custom_call.1} parent=1 // pred_check
      _
    $region19: #{tpu_custom_call.1} parent=1 // pred_check_branch
      %44 = sbr.rel (0) target = $region21
    $region20: #{tpu_custom_call.1} parent=1 // pred_region
      %46 = vsyncadd [#allocation7], 0
      %s48 = sshll.u32 %s4, 4
      %s49 = int_to_ptr.hbm [resolvable:$true] %s48
      %s50 = sshll.u32 [#allocation6], 4
      %s51 = int_to_ptr.vmem [resolvable:$true] %s50
      %53 = dma.hbm_to_vmem [thread:$0]  %s49, 16, %s51, [#allocation7]
    $region21: #{tpu_custom_call.1} parent=1 // pred_fallthru
      _
    // Predicated region
    $region22: #{tpu_custom_call.1} parent=1 // pred_check
      _
    $region23: #{tpu_custom_call.1} parent=1 // pred_check_branch
      %55 = sbr.rel (0) target = $region25
    $region24: #{tpu_custom_call.1} parent=1 // pred_region
      %57 = vsyncadd [#allocation7], 0
      %s58 = sshll.u32 %s5, 4
      %s59 = int_to_ptr.hbm [resolvable:$true] %s58
      %s60 = sshll.u32 [#allocation8], 4
      %s61 = int_to_ptr.vmem [resolvable:$true] %s60
      %66 = dma.hbm_to_vmem [thread:$0]  %s59, 256, %s61, [#allocation7], 64, 64, 4
    $region25: #{tpu_custom_call.1} parent=1 // pred_fallthru
      _
    // Predicated region
    $region26: #{tpu_custom_call.1} parent=1 // pred_check
      _
    $region27: #{tpu_custom_call.1} parent=1 // pred_check_branch
      %68 = sbr.rel (0) target = $region29
    $region28: #{tpu_custom_call.1} parent=1 // pred_region
      %70 = vsyncadd [#allocation10], 0
      %s72 = sshll.u32 %s6, 4
      %s73 = int_to_ptr.hbm [resolvable:$true] %s72
      %s74 = sshll.u32 [#allocation9], 4
      %s75 = int_to_ptr.vmem [resolvable:$true] %s74
      %77 = dma.hbm_to_vmem [thread:$0]  %s73, 16, %s75, [#allocation10]
    $region29: #{tpu_custom_call.1} parent=1 // pred_fallthru
      _
    // Predicated region
    $region30: #{tpu_custom_call.1} parent=1 // pred_check
      _
    $region31: #{tpu_custom_call.1} parent=1 // pred_check_branch
      %79 = sbr.rel (0) target = $region33
    $region32: #{tpu_custom_call.1} parent=1 // pred_region
      %81 = vsyncadd [#allocation10], 0
      %s82 = sshll.u32 %s7, 4
      %s83 = int_to_ptr.hbm [resolvable:$true] %s82
      %s84 = sshll.u32 [#allocation11], 4
      %s85 = int_to_ptr.vmem [resolvable:$true] %s84
      %90 = dma.hbm_to_vmem [thread:$0]  %s83, 256, %s85, [#allocation10], 64, 64, 4
    $region33: #{tpu_custom_call.1} parent=1 // pred_fallthru
      _
    // Predicated region
    $region34: #{tpu_custom_call.1} parent=1 // pred_check
      _
    $region35: #{tpu_custom_call.1} parent=1 // pred_check_branch
      %92 = sbr.rel (0) target = $region37
    $region36: #{tpu_custom_call.1} parent=1 // pred_region
      _
    $region37: #{tpu_custom_call.1} parent=1 // pred_fallthru
      _
    // Predicated region
    $region38: #{tpu_custom_call.1} parent=1 // pred_check
      _
    $region39: #{tpu_custom_call.1} parent=1 // pred_check_branch
      %94 = sbr.rel (0) target = $region41
    $region40: #{tpu_custom_call.1} parent=1 // pred_region
      _
    $region41: #{tpu_custom_call.1} parent=1 // pred_fallthru
      _
    // Predicated region
    $region42: #{tpu_custom_call.1} parent=1 // pred_check
      _
    $region43: #{tpu_custom_call.1} parent=1 // pred_check_branch
      %96 = sbr.rel (0) target = $region45
    $region44: #{tpu_custom_call.1} parent=1 // pred_region
      _
    $region45: #{tpu_custom_call.1} parent=1 // pred_fallthru
      _
    // Predicated region
    $region46: #{tpu_custom_call.1} parent=1 // pred_check
      _
    $region47: #{tpu_custom_call.1} parent=1 // pred_check_branch
      %98 = sbr.rel (0) target = $region49
    $region48: #{tpu_custom_call.1} parent=1 // pred_region
      _
    $region49: #{tpu_custom_call.1} parent=1 // pred_fallthru
      _
    // Predicated region
    $region50: #{tpu_custom_call.1} parent=1 // pred_check
      _
    $region51: #{tpu_custom_call.1} parent=1 // pred_check_branch
      %100 = sbr.rel (0) target = $region53
    $region52: #{tpu_custom_call.1} parent=1 // pred_region
      _
    $region53: #{tpu_custom_call.1} parent=1 // pred_fallthru
      _
    // Predicated region
    $region54: #{tpu_custom_call.1} parent=1 // pred_check
      _
    $region55: #{tpu_custom_call.1} parent=1 // pred_check_branch
      %102 = sbr.rel (0) target = $region57
    $region56: #{tpu_custom_call.1} parent=1 // pred_region
      %104 = dma.done [#allocation4], 768
    $region57: #{tpu_custom_call.1} parent=1 // pred_fallthru
      _
    // Predicated region
    $region58: #{tpu_custom_call.1} parent=1 // pred_check
      _
    $region59: #{tpu_custom_call.1} parent=1 // pred_check_branch
      %106 = sbr.rel (0) target = $region61
    $region60: #{tpu_custom_call.1} parent=1 // pred_region
      %108 = dma.done [#allocation7], 16
    $region61: #{tpu_custom_call.1} parent=1 // pred_fallthru
      _
    // Predicated region
    $region62: #{tpu_custom_call.1} parent=1 // pred_check
      _
    $region63: #{tpu_custom_call.1} parent=1 // pred_check_branch
      %110 = sbr.rel (0) target = $region65
    $region64: #{tpu_custom_call.1} parent=1 // pred_region
      %112 = dma.done [#allocation7], 256
    $region65: #{tpu_custom_call.1} parent=1 // pred_fallthru
      _
    // Predicated region
    $region66: #{tpu_custom_call.1} parent=1 // pred_check
      _
    $region67: #{tpu_custom_call.1} parent=1 // pred_check_branch
      %114 = sbr.rel (0) target = $region69
    $region68: #{tpu_custom_call.1} parent=1 // pred_region
      %116 = dma.done [#allocation10], 16
    $region69: #{tpu_custom_call.1} parent=1 // pred_fallthru
      _
    // Predicated region
    $region70: #{tpu_custom_call.1} parent=1 // pred_check
      _
    $region71: #{tpu_custom_call.1} parent=1 // pred_check_branch
      %118 = sbr.rel (0) target = $region73
    $region72: #{tpu_custom_call.1} parent=1 // pred_region
      %120 = dma.done [#allocation10], 256
    $region73: #{tpu_custom_call.1} parent=1 // pred_fallthru
      _
    %v122 = vld [vmem:[%s0] sm:$0xe]
    %v123 = vld [vmem:[%s0 + $0x4] sm:$0x7]
    %v124 = vld [vmem:[%s0 + $0x8] sm:$0xe]
    %v125 = vld [vmem:[%s0 + $0xc] sm:$0x7]
    %v126 = vunpack.c.l.bf16 %v122
    %v127 = vunpack.c.l.bf16 %v123
    %v128 = vunpack.c.l.bf16 %v124
    %v129 = vunpack.c.l.bf16 %v125
    %vm134 = vcmask 1044480
    %v135 = vrot.slane %v126, 3
    %v136 = vrot.slane %v127, 3
    %v137 = vsel %vm134, %v135, %v136
    %v138 = vrot.slane %v128, 3
    %v139 = vrot.slane %v129, 3
    %v140 = vsel %vm134, %v138, %v139
    %vm145 = vcmask 261120
    %v146 = vsel %vm145, %v137, 0.0
    %vm147 = vcmask 256000
    %v148 = vsel %vm147, %v136, 0.0
    %v149 = vadd.f32 %v146, %v148
    %v150 = vrot.slane %v149, 4
    %v151 = vadd.f32 %v149, %v150
    %v152 = vrot.slane %v151, 2
    %v153 = vadd.f32 %v151, %v152
    %v154 = vrot.slane %v153, 1
    %v155 = vadd.f32 %v153, %v154
    %v156 = vsel %vm145, %v140, 0.0
    %v157 = vsel %vm147, %v139, 0.0
    %v158 = vadd.f32 %v156, %v157
    %v159 = vrot.slane %v158, 4
    %v160 = vadd.f32 %v158, %v159
    %v161 = vrot.slane %v160, 2
    %v162 = vadd.f32 %v160, %v161
    %v163 = vrot.slane %v162, 1
    %v164 = vadd.f32 %v162, %v163
    %v165 = vmul.f32 %v155, 0.09090909
    %v166 = vmul.f32 %v164, 0.09090909
    %v167 = vpack.c.bf16 %v165, %v165
    %v168 = vpack.c.bf16 %v166, %v166
    %v169 = vld [vmem:[#allocation3] sm:$0xf]
    %v170 = vld [vmem:[#allocation3 + $0x4] sm:$0xf]
    %v171 = vld [vmem:[#allocation3 + $0x8] sm:$0xf]
    %v172 = vld [vmem:[#allocation3 + $0xc] sm:$0xf]
    %v173 = vld [vmem:[%s2] sm:$0x1]
    %v174 = vperm.slane %v173, 0
    %v177 = vunpack.c.l.b16 %v167
    %v178 = vunpack.c.l.b16 %v168
    %vm179 = vcmask 1041409
    %v180 = vsel %vm179, %v178, %v177
    %v181 = vpack.c.b16 %v180, %v180
    %v186 = vunpack.c.l.b16 %v169
    %v187 = vunpack.c.l.b16 %v170
    %v188 = vunpack.c.l.b16 %v171
    %v189 = vunpack.c.l.b16 %v172
    %v190 = vpack.c.b16 %v187, %v186
    %v191 = vpack.c.b16 %v189, %v188
    %v195 = vsel %vm145, %v181, 0
    %197 = vmatpush.bf16.msra.mxu0 0
    %198 = vmatpush.bf16.msra.mxu0 0
    %199 = vmatpush.bf16.msra.mxu0 0
    %200 = vmatpush.bf16.msra.mxu0 0
    %201 = vmatpush.bf16.msra.mxu0 0
    %202 = vmatpush.bf16.msra.mxu0 0
    %203 = vmatpush.bf16.msra.mxu0 %v191
    %204 = vmatpush.bf16.msra.mxu0 %v190
    %205 = vmatmul.bf16.gmra.mxu0 %v195
    %v206 = vpop.f32.mrf.mxu0
    %v207 = vadd.f32 %v174, %v206
    %v208 = vpop.f32.mrf.mxu0
    %209 = vdwg.mxu0
    %v210 = vld [vmem:[%s0] sm:$0x3]
    %v211 = vld [vmem:[%s0 + $0x8] sm:$0x3]
    %v212 = vunpack.c.l.bf16 %v210
    %v213 = vunpack.c.l.bf16 %v211
    %v214 = vsel %vm147, %v212, 0.0
    %v215 = vrot.slane %v214, 4
    %v216 = vadd.f32 %v214, %v215
    %v217 = vrot.slane %v216, 2
    %v218 = vadd.f32 %v216, %v217
    %v219 = vrot.slane %v218, 1
    %v220 = vadd.f32 %v218, %v219
    %v221 = vsel %vm147, %v213, 0.0
    %v222 = vrot.slane %v221, 4
    %v223 = vadd.f32 %v221, %v222
    %v224 = vrot.slane %v223, 2
    %v225 = vadd.f32 %v223, %v224
    %v226 = vrot.slane %v225, 1
    %v227 = vadd.f32 %v225, %v226
    %v228 = vadd.f32 %v155, %v220
    %v229 = vadd.f32 %v164, %v227
    %v230 = vld [vmem:[%s0 + $0x4] sm:$0x8]
    %v231 = vld [vmem:[%s0 + $0xc] sm:$0x8]
    %v232 = vunpack.c.l.bf16 %v230
    %v233 = vunpack.c.l.bf16 %v231
    %v236 = vrot.slane %v232, 6
    %v237 = vrot.slane %v233, 6
    %vm240 = vcmask 254976
    %v241 = vsel %vm240, %v236, 0.0
    %v242 = vrot.slane %v241, 4
    %v243 = vadd.f32 %v241, %v242
    %v244 = vrot.slane %v243, 2
    %v245 = vadd.f32 %v243, %v244
    %v246 = vrot.slane %v245, 1
    %v247 = vadd.f32 %v245, %v246
    %v248 = vsel %vm240, %v237, 0.0
    %v249 = vrot.slane %v248, 4
    %v250 = vadd.f32 %v248, %v249
    %v251 = vrot.slane %v250, 2
    %v252 = vadd.f32 %v250, %v251
    %v253 = vrot.slane %v252, 1
    %v254 = vadd.f32 %v252, %v253
    %v255 = vadd.f32 %v228, %v247
    %v256 = vadd.f32 %v229, %v254
    %v257 = vmul.f32 %v255, 0.0625
    %v258 = vmul.f32 %v256, 0.0625
    %v259 = vpack.c.bf16 %v257, %v257
    %v260 = vpack.c.bf16 %v258, %v258
    %s261 = scalar_lea.vmem [#allocation3], 16
    %v262 = vld [vmem:[%s261] sm:$0xf]
    %v263 = vld [vmem:[%s261 + $0x4] sm:$0xf]
    %v264 = vld [vmem:[%s261 + $0x8] sm:$0xf]
    %v265 = vld [vmem:[%s261 + $0xc] sm:$0xf]
    %v266 = vld [vmem:[%s2 + $0x1] sm:$0x1]
    %v267 = vperm.slane %v266, 0
    %v270 = vunpack.c.l.b16 %v259
    %v271 = vunpack.c.l.b16 %v260
    %v272 = vsel %vm179, %v271, %v270
    %v273 = vpack.c.b16 %v272, %v272
    %v278 = vunpack.c.l.b16 %v262
    %v279 = vunpack.c.l.b16 %v263
    %v280 = vunpack.c.l.b16 %v264
    %v281 = vunpack.c.l.b16 %v265
    %v282 = vpack.c.b16 %v279, %v278
    %v283 = vpack.c.b16 %v281, %v280
    %v287 = vsel %vm145, %v273, 0
    %289 = vmatpush.bf16.msra.mxu0 0
    %290 = vmatpush.bf16.msra.mxu0 0
    %291 = vmatpush.bf16.msra.mxu0 0
    %292 = vmatpush.bf16.msra.mxu0 0
    %293 = vmatpush.bf16.msra.mxu0 0
    %294 = vmatpush.bf16.msra.mxu0 0
    %295 = vmatpush.bf16.msra.mxu0 %v283
    %296 = vmatpush.bf16.msra.mxu0 %v282
    %297 = vmatmul.bf16.gmra.mxu0 %v287
    %v298 = vpop.f32.mrf.mxu0
    %v299 = vadd.f32 %v267, %v298
    %v300 = vpop.f32.mrf.mxu0
    %301 = vdwg.mxu0
    %s302 = scalar_lea.vmem [#allocation3], 32
    %v303 = vld [vmem:[%s302] sm:$0xf]
    %v304 = vld [vmem:[%s302 + $0x4] sm:$0xf]
    %v305 = vld [vmem:[%s302 + $0x8] sm:$0xf]
    %v306 = vld [vmem:[%s302 + $0xc] sm:$0xf]
    %v307 = vld [vmem:[%s2 + $0x2] sm:$0x1]
    %v308 = vperm.slane %v307, 0
    %v313 = vunpack.c.l.b16 %v303
    %v314 = vunpack.c.l.b16 %v304
    %v315 = vunpack.c.l.b16 %v305
    %v316 = vunpack.c.l.b16 %v306
    %v317 = vpack.c.b16 %v314, %v313
    %v318 = vpack.c.b16 %v316, %v315
    %321 = vmatpush.bf16.msra.mxu0 0
    %322 = vmatpush.bf16.msra.mxu0 0
    %323 = vmatpush.bf16.msra.mxu0 0
    %324 = vmatpush.bf16.msra.mxu0 0
    %325 = vmatpush.bf16.msra.mxu0 0
    %326 = vmatpush.bf16.msra.mxu0 0
    %327 = vmatpush.bf16.msra.mxu0 %v318
    %328 = vmatpush.bf16.msra.mxu0 %v317
    %329 = vmatmul.bf16.gmra.mxu0 %v287
    %v330 = vpop.f32.mrf.mxu0
    %v331 = vadd.f32 %v308, %v330
    %v332 = vpop.f32.mrf.mxu0
    %333 = vdwg.mxu0
    %v335 = vrot.slane %v299, 6
    %v338 = vrot.slane %v331, 4
    %vm340 = vcmask 1041408
    %v341 = vsel %vm340, %v207, %v335
    %vm342 = vcmask 1043456
    %v343 = vsel %vm342, %v341, %v338
    %v344 = vpack.c.bf16 %v343, %v343
    %v345 = vld [vmem:[%s3] sm:$0xf]
    %v346 = vld [vmem:[%s3 + $0x4] sm:$0xf]
    %v347 = vld [vmem:[%s3 + $0x8] sm:$0xf]
    %v348 = vld [vmem:[%s3 + $0xc] sm:$0xf]
    %v349 = vld [vmem:[#allocation6] sm:$0x1]
    %v351 = vperm.slane %v349, 0
    %v357 = vunpack.c.l.b16 %v345
    %v358 = vunpack.c.l.b16 %v346
    %v359 = vunpack.c.l.b16 %v347
    %v360 = vunpack.c.l.b16 %v348
    %v361 = vpack.c.b16 %v358, %v357
    %v362 = vpack.c.b16 %v360, %v359
    %v366 = vsel %vm145, %v344, 0
    %368 = vmatpush.bf16.msra.mxu0 0
    %369 = vmatpush.bf16.msra.mxu0 0
    %370 = vmatpush.bf16.msra.mxu0 0
    %371 = vmatpush.bf16.msra.mxu0 0
    %372 = vmatpush.bf16.msra.mxu0 0
    %373 = vmatpush.bf16.msra.mxu0 0
    %374 = vmatpush.bf16.msra.mxu0 %v362
    %375 = vmatpush.bf16.msra.mxu0 %v361
    %376 = vmatmul.bf16.gmra.mxu0 %v366
    %v377 = vpop.f32.mrf.mxu0
    %v378 = vadd.f32 %v351, %v377
    %v379 = vpop.f32.mrf.mxu0
    %380 = vdwg.mxu0
    %382 = vrot.lane.b32.xlu0 %v378, 96
    %v383 = vpop.permute.xlu0 %382
    %v385 = vmul.f32 %v378, %v383
    %v386 = vrot.slane %v378, 2
    %387 = vrot.lane.b32.xlu0 %v386, 96
    %v388 = vpop.permute.xlu0 %387
    %v390 = vmul.f32 %v378, %v388
    %v391 = vrot.slane %v378, 4
    %392 = vrot.lane.b32.xlu0 %v391, 96
    %v393 = vpop.permute.xlu0 %392
    %v395 = vmul.f32 %v378, %v393
    %v397 = vrot.slane %v390, 6
    %v400 = vrot.slane %v395, 4
    %v402 = vsel %vm340, %v385, %v397
    %v403 = vsel %vm342, %v402, %v400
    %v404 = vld [vmem:[%s11] sm:$0xff]
    %v405 = vld [vmem:[%s11 + $0x8] sm:$0xff]
    %v406 = vld [vmem:[%s11 + $0x10] sm:$0xff]
    %v407 = vld [vmem:[%s11 + $0x18] sm:$0xff]
    %v409 = vsel %vm145, %v403, 0
    %411 = vmatpush.msra.mxu0 0.0
    %412 = vmatpush.msra.mxu0 0.0
    %413 = vmatpush.msra.mxu0 0.0
    %414 = vmatpush.msra.mxu0 0.0
    %415 = vmatpush.msra.mxu0 0.0
    %416 = vmatpush.msra.mxu0 0.0
    %417 = vmatpush.msra.mxu0 0.0
    %418 = vmatpush.msra.mxu0 0.0
    %419 = vmatpush.msra.mxu0 0.0
    %420 = vmatpush.msra.mxu0 0.0
    %421 = vmatpush.msra.mxu0 0.0
    %422 = vmatpush.msra.mxu0 0.0
    %423 = vmatpush.msra.mxu0 %v407
    %424 = vmatpush.msra.mxu0 %v406
    %425 = vmatpush.msra.mxu0 %v405
    %426 = vmatpush.msra.mxu0 %v404
    %427 = vmatmul.f32.gmra.mxu0 %v409
    %v428 = vpop.f32.mrf.mxu0
    %v429 = vadd.f32 0.0, %v428
    %430 = vdwg.mxu0
    %v432 = vrot.slane %v429, 2
    %v434 = vmax.f32 %v429, %v432
    %v435 = vrot.slane %v429, 4
    %v437 = vmax.f32 %v434, %v435
    %v438 = vsub.f32 %v429, %v437
    %v439 = vmul.f32 %v438, 1.442695
    %v440 = vpow.pop %v439
    %v442 = vrot.slane %v437, 6
    %v444 = vsub.f32 %v429, %v442
    %v445 = vmul.f32 %v444, 1.442695
    %v446 = vpow.pop %v445
    %v447 = vrot.slane %v437, 4
    %v449 = vsub.f32 %v429, %v447
    %v450 = vmul.f32 %v449, 1.442695
    %v451 = vpow.pop %v450
    %v453 = vrot.slane %v446, 2
    %v455 = vadd.f32 %v440, %v453
    %v457 = vrot.slane %v451, 4
    %v459 = vadd.f32 %v455, %v457
    %v460 = vrcp.pop %v459
    %v461 = vmul.f32 %v440, %v460
    %v463 = vrot.slane %v460, 6
    %v465 = vmul.f32 %v446, %v463
    %v466 = vrot.slane %v460, 4
    %v468 = vmul.f32 %v451, %v466
    %v469 = vsel %vm340, %v461, %v465
    %v470 = vsel %vm342, %v469, %v468
    %v471 = vld [vmem:[%s12] sm:$0xf]
    %vm472 = vcmask 31744
    %v474 = vsel %vm472, %v470, 0
    %v477 = vsel %vm342, %v471, 0
    %479 = vmatpush.msra.mxu0 0.0
    %480 = vmatpush.msra.mxu0 0.0
    %481 = vmatpush.msra.mxu0 0.0
    %482 = vmatpush.msra.mxu0 0.0
    %483 = vmatpush.msra.mxu0 0.0
    %484 = vmatpush.msra.mxu0 0.0
    %485 = vmatpush.msra.mxu0 0.0
    %486 = vmatpush.msra.mxu0 0.0
    %487 = vmatpush.msra.mxu0 0.0
    %488 = vmatpush.msra.mxu0 0.0
    %489 = vmatpush.msra.mxu0 0.0
    %490 = vmatpush.msra.mxu0 0.0
    %491 = vmatpush.msra.mxu0 0.0
    %492 = vmatpush.msra.mxu0 0.0
    %493 = vmatpush.msra.mxu0 0.0
    %494 = vmatpush.msra.mxu0 %v477
    %495 = vmatmul.f32.gmra.mxu0 %v474
    %v496 = vpop.f32.mrf.mxu0
    %v497 = vadd.f32 0.0, %v496
    %498 = vdwg.mxu0
    %499 = vrot.lane.b32.xlu0 %v378, 64
    %v500 = vpop.permute.xlu0 %499
    %v502 = vmul.f32 %v497, %v500
    %v504 = vrot.slane %v502, 2
    %v506 = vadd.f32 %v502, %v504
    %v507 = vrot.slane %v502, 4
    %v509 = vadd.f32 %v506, %v507
    %v510 = vrot.slane %v378, 6
    %511 = vrot.lane.b32.xlu0 %v510, 96
    %v512 = vpop.permute.xlu0 %511
    %v514 = vmul.f32 %v378, %v512
    %v516 = vrot.slane %v514, 2
    %v518 = vsel %vm340, %v516, %v385
    %v519 = vsel %vm342, %v518, %v397
    %v521 = vsel %vm145, %v519, 0
    %523 = vmatpush.msra.mxu0 0.0
    %524 = vmatpush.msra.mxu0 0.0
    %525 = vmatpush.msra.mxu0 0.0
    %526 = vmatpush.msra.mxu0 0.0
    %527 = vmatpush.msra.mxu0 0.0
    %528 = vmatpush.msra.mxu0 0.0
    %529 = vmatpush.msra.mxu0 0.0
    %530 = vmatpush.msra.mxu0 0.0
    %531 = vmatpush.msra.mxu0 0.0
    %532 = vmatpush.msra.mxu0 0.0
    %533 = vmatpush.msra.mxu0 0.0
    %534 = vmatpush.msra.mxu0 0.0
    %535 = vmatpush.msra.mxu0 %v407
    %536 = vmatpush.msra.mxu0 %v406
    %537 = vmatpush.msra.mxu0 %v405
    %538 = vmatpush.msra.mxu0 %v404
    %539 = vmatmul.f32.gmra.mxu0 %v521
    %v540 = vpop.f32.mrf.mxu0
    %v541 = vadd.f32 0.0, %v540
    %542 = vdwg.mxu0
    %v544 = vrot.slane %v541, 2
    %v546 = vmax.f32 %v541, %v544
    %v547 = vrot.slane %v541, 4
    %v549 = vmax.f32 %v546, %v547
    %v550 = vsub.f32 %v541, %v549
    %v551 = vmul.f32 %v550, 1.442695
    %v552 = vpow.pop %v551
    %v554 = vrot.slane %v549, 6
    %v556 = vsub.f32 %v541, %v554
    %v557 = vmul.f32 %v556, 1.442695
    %v558 = vpow.pop %v557
    %v559 = vrot.slane %v549, 4
    %v561 = vsub.f32 %v541, %v559
    %v562 = vmul.f32 %v561, 1.442695
    %v563 = vpow.pop %v562
    %v565 = vrot.slane %v558, 2
    %v567 = vadd.f32 %v552, %v565
    %v569 = vrot.slane %v563, 4
    %v571 = vadd.f32 %v567, %v569
    %v572 = vrcp.pop %v571
    %v573 = vmul.f32 %v552, %v572
    %v575 = vrot.slane %v572, 6
    %v577 = vmul.f32 %v558, %v575
    %v578 = vrot.slane %v572, 4
    %v580 = vmul.f32 %v563, %v578
    %v581 = vsel %vm340, %v573, %v577
    %v582 = vsel %vm342, %v581, %v580
    %v584 = vsel %vm472, %v582, 0
    %586 = vmatpush.msra.mxu0 0.0
    %587 = vmatpush.msra.mxu0 0.0
    %588 = vmatpush.msra.mxu0 0.0
    %589 = vmatpush.msra.mxu0 0.0
    %590 = vmatpush.msra.mxu0 0.0
    %591 = vmatpush.msra.mxu0 0.0
    %592 = vmatpush.msra.mxu0 0.0
    %593 = vmatpush.msra.mxu0 0.0
    %594 = vmatpush.msra.mxu0 0.0
    %595 = vmatpush.msra.mxu0 0.0
    %596 = vmatpush.msra.mxu0 0.0
    %597 = vmatpush.msra.mxu0 0.0
    %598 = vmatpush.msra.mxu0 0.0
    %599 = vmatpush.msra.mxu0 0.0
    %600 = vmatpush.msra.mxu0 0.0
    %601 = vmatpush.msra.mxu0 %v477
    %602 = vmatmul.f32.gmra.mxu0 %v584
    %v603 = vpop.f32.mrf.mxu0
    %v604 = vadd.f32 0.0, %v603
    %605 = vdwg.mxu0
    %v606 = vmul.f32 %v604, %v500
    %v608 = vrot.slane %v606, 2
    %v610 = vadd.f32 %v606, %v608
    %v611 = vrot.slane %v606, 4
    %v613 = vadd.f32 %v610, %v611
    %v614 = vsel %vm340, %v400, %v516
    %v615 = vsel %vm342, %v614, %v385
    %v617 = vsel %vm145, %v615, 0
    %619 = vmatpush.msra.mxu0 0.0
    %620 = vmatpush.msra.mxu0 0.0
    %621 = vmatpush.msra.mxu0 0.0
    %622 = vmatpush.msra.mxu0 0.0
    %623 = vmatpush.msra.mxu0 0.0
    %624 = vmatpush.msra.mxu0 0.0
    %625 = vmatpush.msra.mxu0 0.0
    %626 = vmatpush.msra.mxu0 0.0
    %627 = vmatpush.msra.mxu0 0.0
    %628 = vmatpush.msra.mxu0 0.0
    %629 = vmatpush.msra.mxu0 0.0
    %630 = vmatpush.msra.mxu0 0.0
    %631 = vmatpush.msra.mxu0 %v407
    %632 = vmatpush.msra.mxu0 %v406
    %633 = vmatpush.msra.mxu0 %v405
    %634 = vmatpush.msra.mxu0 %v404
    %635 = vmatmul.f32.gmra.mxu0 %v617
    %v636 = vpop.f32.mrf.mxu0
    %v637 = vadd.f32 0.0, %v636
    %638 = vdwg.mxu0
    %v640 = vrot.slane %v637, 2
    %v642 = vmax.f32 %v637, %v640
    %v643 = vrot.slane %v637, 4
    %v645 = vmax.f32 %v642, %v643
    %v646 = vsub.f32 %v637, %v645
    %v647 = vmul.f32 %v646, 1.442695
    %v648 = vpow.pop %v647
    %v650 = vrot.slane %v645, 6
    %v652 = vsub.f32 %v637, %v650
    %v653 = vmul.f32 %v652, 1.442695
    %v654 = vpow.pop %v653
    %v655 = vrot.slane %v645, 4
    %v657 = vsub.f32 %v637, %v655
    %v658 = vmul.f32 %v657, 1.442695
    %v659 = vpow.pop %v658
    %v661 = vrot.slane %v654, 2
    %v663 = vadd.f32 %v648, %v661
    %v665 = vrot.slane %v659, 4
    %v667 = vadd.f32 %v663, %v665
    %v668 = vrcp.pop %v667
    %v669 = vmul.f32 %v648, %v668
    %v671 = vrot.slane %v668, 6
    %v673 = vmul.f32 %v654, %v671
    %v674 = vrot.slane %v668, 4
    %v676 = vmul.f32 %v659, %v674
    %v677 = vsel %vm340, %v669, %v673
    %v678 = vsel %vm342, %v677, %v676
    %v680 = vsel %vm472, %v678, 0
    %682 = vmatpush.msra.mxu0 0.0
    %683 = vmatpush.msra.mxu0 0.0
    %684 = vmatpush.msra.mxu0 0.0
    %685 = vmatpush.msra.mxu0 0.0
    %686 = vmatpush.msra.mxu0 0.0
    %687 = vmatpush.msra.mxu0 0.0
    %688 = vmatpush.msra.mxu0 0.0
    %689 = vmatpush.msra.mxu0 0.0
    %690 = vmatpush.msra.mxu0 0.0
    %691 = vmatpush.msra.mxu0 0.0
    %692 = vmatpush.msra.mxu0 0.0
    %693 = vmatpush.msra.mxu0 0.0
    %694 = vmatpush.msra.mxu0 0.0
    %695 = vmatpush.msra.mxu0 0.0
    %696 = vmatpush.msra.mxu0 0.0
    %697 = vmatpush.msra.mxu0 %v477
    %698 = vmatmul.f32.gmra.mxu0 %v680
    %v699 = vpop.f32.mrf.mxu0
    %v700 = vadd.f32 0.0, %v699
    %701 = vdwg.mxu0
    %v702 = vmul.f32 %v700, %v500
    %v704 = vrot.slane %v702, 2
    %v706 = vadd.f32 %v702, %v704
    %v707 = vrot.slane %v702, 4
    %v709 = vadd.f32 %v706, %v707
    %v711 = vrot.slane %v613, 6
    %v714 = vrot.slane %v709, 4
    %v716 = vsel %vm340, %v509, %v711
    %v717 = vsel %vm342, %v716, %v714
    %v718 = vpack.c.bf16 %v717, %v717
    %v719 = vld [vmem:[#allocation8] sm:$0xf]
    %v720 = vld [vmem:[#allocation8 + $0x4] sm:$0xf]
    %v721 = vld [vmem:[#allocation8 + $0x8] sm:$0xf]
    %v722 = vld [vmem:[#allocation8 + $0xc] sm:$0xf]
    %v723 = vld [vmem:[#allocation9] sm:$0x1]
    %v725 = vperm.slane %v723, 0
    %v731 = vunpack.c.l.b16 %v719
    %v732 = vunpack.c.l.b16 %v720
    %v733 = vunpack.c.l.b16 %v721
    %v734 = vunpack.c.l.b16 %v722
    %v735 = vpack.c.b16 %v732, %v731
    %v736 = vpack.c.b16 %v734, %v733
    %v740 = vsel %vm145, %v718, 0
    %742 = vmatpush.bf16.msra.mxu0 0
    %743 = vmatpush.bf16.msra.mxu0 0
    %744 = vmatpush.bf16.msra.mxu0 0
    %745 = vmatpush.bf16.msra.mxu0 0
    %746 = vmatpush.bf16.msra.mxu0 0
    %747 = vmatpush.bf16.msra.mxu0 0
    %748 = vmatpush.bf16.msra.mxu0 %v736
    %749 = vmatpush.bf16.msra.mxu0 %v735
    %750 = vmatmul.bf16.gmra.mxu0 %v740
    %v751 = vpop.f32.mrf.mxu0
    %v752 = vadd.f32 %v725, %v751
    %v753 = vpop.f32.mrf.mxu0
    %754 = vdwg.mxu0
    %v756 = vrot.slane %v752, 2
    %v758 = vadd.f32 %v752, %v756
    %v759 = vrot.slane %v752, 4
    %v761 = vadd.f32 %v758, %v759
    %v762 = vmul.f32 %v761, 0.33333334
    %v763 = vpack.c.bf16 %v762, %v762
    %v764 = vld [vmem:[#allocation11] sm:$0xf]
    %v765 = vld [vmem:[#allocation11 + $0x4] sm:$0xf]
    %v766 = vld [vmem:[#allocation11 + $0x8] sm:$0xf]
    %v767 = vld [vmem:[#allocation11 + $0xc] sm:$0xf]
    %v768 = vld [vmem:[%s8] sm:$0x1]
    %v770 = vperm.slane %v768, 0
    %v776 = vunpack.c.l.b16 %v764
    %v777 = vunpack.c.l.b16 %v765
    %v778 = vunpack.c.l.b16 %v766
    %v779 = vunpack.c.l.b16 %v767
    %v780 = vpack.c.b16 %v777, %v776
    %v781 = vpack.c.b16 %v779, %v778
    %v785 = vsel %vm145, %v763, 0
    %787 = vmatpush.bf16.msra.mxu0 0
    %788 = vmatpush.bf16.msra.mxu0 0
    %789 = vmatpush.bf16.msra.mxu0 0
    %790 = vmatpush.bf16.msra.mxu0 0
    %791 = vmatpush.bf16.msra.mxu0 0
    %792 = vmatpush.bf16.msra.mxu0 0
    %793 = vmatpush.bf16.msra.mxu0 %v781
    %794 = vmatpush.bf16.msra.mxu0 %v780
    %795 = vmatmul.bf16.gmra.mxu0 %v785
    %v796 = vpop.f32.mrf.mxu0
    %v797 = vadd.f32 %v770, %v796
    %v798 = vpop.f32.mrf.mxu0
    %799 = vdwg.mxu0
    %v800 = vmax.f32 %v797, 0.0
    %v801 = vld [vmem:[%s9] sm:$0x1]
    %v802 = vld [vmem:[#allocation2] sm:$0x1]
    %804 = vset.pattern.permute.xlu0 0
    %805 = vperm.xlu0 %804, %v802
    %v806 = vpop.permute.xlu0 %805
    %v808 = vperm.slane %v806, 0
    %809 = vmatpush.xpose.msra.mxu0 0.0
    %810 = vmatpush.xpose.msra.mxu0 0.0
    %811 = vmatpush.xpose.msra.mxu0 0.0
    %812 = vmatpush.xpose.msra.mxu0 0.0
    %813 = vmatpush.xpose.msra.mxu0 0.0
    %814 = vmatpush.xpose.msra.mxu0 0.0
    %815 = vmatpush.xpose.msra.mxu0 0.0
    %816 = vmatpush.xpose.msra.mxu0 0.0
    %817 = vmatpush.xpose.msra.mxu0 0.0
    %818 = vmatpush.xpose.msra.mxu0 0.0
    %819 = vmatpush.xpose.msra.mxu0 0.0
    %820 = vmatpush.xpose.msra.mxu0 0.0
    %821 = vmatpush.xpose.msra.mxu0 0.0
    %822 = vmatpush.xpose.msra.mxu0 0.0
    %823 = vmatpush.xpose.msra.mxu0 0.0
    %824 = vmatpush.xpose.msra.mxu0 %v800
    %825 = vmatmul.f32.gmra.mxu0 %v801
    %v826 = vpop.f32.mrf.mxu0
    %v827 = vadd.f32 %v808, %v826
    %828 = vdwg.mxu0
    %vm829 = vcmask 8192
    %830 = vst.msk [vmem:[#allocation12] sm:$0x1] %vm829, %v827
    // Predicated region
    $region74: #{tpu_custom_call.1} parent=1 // pred_check
      _
    $region75: #{tpu_custom_call.1} parent=1 // pred_check_branch
      %832 = sbr.rel (0) target = $region77
    $region76: #{tpu_custom_call.1} parent=1 // pred_region
      %834 = vsyncadd [#allocation5], 0
      %s836 = sshll.u32 [#allocation12], 4
      %s837 = int_to_ptr.vmem [resolvable:$true] %s836
      %s838 = sshll.u32 %s13, 4
      %s839 = int_to_ptr.hbm [resolvable:$true] %s838
      %841 = dma.vmem_to_hbm [thread:$0]  %s837, 16, %s839, [#allocation5]
    $region77: #{tpu_custom_call.1} parent=1 // pred_fallthru
      _
    // Predicated region
    $region78: #{tpu_custom_call.1} parent=1 // pred_check
      _
    $region79: #{tpu_custom_call.1} parent=1 // pred_check_branch
      %843 = sbr.rel (0) target = $region81
    $region80: #{tpu_custom_call.1} parent=1 // pred_region
      %845 = dma.done [#allocation5], 16
    $region81: #{tpu_custom_call.1} parent=1 // pred_fallthru
      _
    %846 = vsyncpa [#allocation4], 1
    %847 = vsyncpa [#allocation7], 1
    %848 = vsyncpa [#allocation10], 1
    %849 = vsyncpa [#allocation5], 1

</llo_original>
